<compile_context>
chip_gen: v6e
topology: v6e:2x2x1
jax: 0.10.0
libtpu: 0.0.40
codegen_flags: <defaults>
</compile_context>

<pallas_src>
import functools
import math

import numpy as np
import jax
import jax.numpy as jnp
from jax.experimental import pallas as pl
from jax.experimental.pallas import tpu as pltpu


def _round_up(x, m):
    return (x + m - 1) // m * m


# ---------------------------------------------------------------------------
# Kernels
# ---------------------------------------------------------------------------
def _linear_kernel(w_ref, b_ref, x_ref, o_ref):
    """y = x @ W^T + b on a (tm, H_in) row tile.  Bias is zeros if bias=False."""
    y = jnp.dot(x_ref[...], w_ref[...], preferred_element_type=jnp.float32)
    o_ref[...] = (y + b_ref[...]).astype(o_ref.dtype)


def _node_prepare_kernel(w_ref, b_ref, m_ref, x_ref, o_ref):
    """use_node=True:  sum_k Linear_k(x * mask_k) == sum_k mask_k * (x @ W_k^T) + b_sum.

    w_ref : (H, 5H) bf16  concatenated, pre-transposed weights
    b_ref : (1, H)  f32   sum of the 5 biases (hoisted; query slot pre-scaled)
    m_ref : (tm, 5) f32   per-row 0/1 group masks (row-major -> sublane aligned)
    x_ref : (tm, H) bf16  flattened input rows

    Per-slab accumulation: identical MXU work to one wide (tm, 5H) dot but the
    live vector state is a single (tm, H) f32 accumulator (no VMEM spills).
    """
    h = o_ref.shape[-1]
    x = x_ref[...]
    m = m_ref[...]                                         # (tm, 5) f32
    acc = m[:, 0:1] * jnp.dot(x, w_ref[:, 0:h],
                              preferred_element_type=jnp.float32)
    for k in range(1, 5):                                  # static unroll
        yk = jnp.dot(x, w_ref[:, k * h:(k + 1) * h],
                     preferred_element_type=jnp.float32)
        acc = acc + m[:, k:k + 1] * yk
    o_ref[...] = (acc + b_ref[...]).astype(o_ref.dtype)


def _attn_kernel(q_ref, k_ref, v_ref, m_ref, o_ref, *, heads):
    """Masked softmax attention, all batches in the block, heads as lane slices.

    q/k/v refs: (bb, S, H) bf16 (natural layout -- no wrapper transposes).
    m_ref     : (bb, S, S) additive bias, 0 = keep, -1e5 = masked.
    o_ref     : (bb, S, H) -- heads re-merged, lane-dense (H multiple of 128).

    The 1/sqrt(dh) scale is pre-folded into the query projection weights.
    """
    dh = q_ref.shape[-1] // heads
    q = q_ref[...]
    k = k_ref[...]
    v = v_ref[...]
    bias = m_ref[...].astype(jnp.float32)                  # hoisted cast
    outs = []
    for h in range(heads):                                 # static unroll
        sl = slice(h * dh, (h + 1) * dh)
        s = jnp.einsum("bqd,bkd->bqk", q[:, :, sl], k[:, :, sl],
                       preferred_element_type=jnp.float32) + bias
        s = s - jnp.max(s, axis=-1, keepdims=True)         # stable softmax (f32)
        p = jnp.exp(s)
        p = p * pl.reciprocal(jnp.sum(p, axis=-1, keepdims=True), approx=True)
        outs.append(jnp.einsum("bqk,bkd->bqd", p.astype(v.dtype), v[:, :, sl],
                               preferred_element_type=jnp.float32))
    o_ref[...] = jnp.concatenate(outs, axis=-1).astype(o_ref.dtype)


# ---------------------------------------------------------------------------
# Pallas wrappers
# ---------------------------------------------------------------------------
def linear_2d(x2d, w_t, b, *, tm_max=256, compute_dtype=jnp.bfloat16,
              out_dtype=None):
    """(M, H_in) @ (H_in, H_out) + b with row tiling."""
    M, H_in = x2d.shape
    H_out = w_t.shape[1]
    out_dtype = x2d.dtype if out_dtype is None else out_dtype
    tm = min(tm_max, _round_up(M, 8))     # v6e can use 512; keep 256 for v7x VMEM
    M_pad = _round_up(M, tm)
    xp = jnp.pad(x2d.astype(compute_dtype), ((0, M_pad - M), (0, 0)))
    out = pl.pallas_call(
        _linear_kernel,
        out_shape=jax.ShapeDtypeStruct((M_pad, H_out), out_dtype),
        grid_spec=pltpu.PrefetchScalarGridSpec(
            num_scalar_prefetch=0,
            grid=(M_pad // tm,),
            in_specs=[
                # Constant-index weight/bias blocks; at production H these
                # should be single-buffered and K-tiled (see TODOs at top).
                pl.BlockSpec((H_in, H_out), lambda i: (0, 0)),
                pl.BlockSpec((1, H_out), lambda i: (0, 0)),
                pl.BlockSpec((tm, H_in), lambda i: (i, 0)),
            ],
            out_specs=pl.BlockSpec((tm, H_out), lambda i: (i, 0)),
        ),
        compiler_params=pltpu.CompilerParams(dimension_semantics=("parallel",)),
    )(w_t.astype(compute_dtype), b.reshape(1, -1).astype(jnp.float32), xp)
    return out[:M]


def fused_prepare(x_list, w_stack, b_stack, row_masks=None, *, tm_max=256,
                  compute_dtype=jnp.bfloat16, out_dtype=jnp.bfloat16):
    """Fused q/k/v projection: one pallas_call with a leading projection axis.

    x_list   : [xq, xk, xv], each (M, H_in)
    w_stack  : (3, H_in, H_out) or (3, H_in, 5*H_out)  (node path)
    b_stack  : (3, 1, H_out)
    row_masks: (M, 5) one-hot per row (node path) or None (plain linear path)
    Returns (3, M, H_out) in out_dtype.
    """
    M, H_in = x_list[0].shape
    H_out = b_stack.shape[-1]
    tm = min(tm_max, _round_up(M, 8))
    M_pad = _round_up(M, tm)
    x_stack = jnp.stack([jnp.pad(x.astype(compute_dtype), ((0, M_pad - M), (0, 0)))
                         for x in x_list])                          # (3, M_pad, H_in)

    w_spec = pl.BlockSpec((None,) + w_stack.shape[1:], lambda p, i: (p, 0, 0))
    b_spec = pl.BlockSpec((None, 1, H_out), lambda p, i: (p, 0, 0))
    x_spec = pl.BlockSpec((None, tm, H_in), lambda p, i: (p, i, 0))
    o_spec = pl.BlockSpec((None, tm, H_out), lambda p, i: (p, i, 0))

    if row_masks is None:
        kernel = _linear_kernel
        in_specs = [w_spec, b_spec, x_spec]
        args = (w_stack.astype(compute_dtype), b_stack.astype(jnp.float32), x_stack)
    else:
        mp = jnp.pad(row_masks.astype(jnp.float32), ((0, M_pad - M), (0, 0)))
        kernel = _node_prepare_kernel
        in_specs = [w_spec, b_spec, pl.BlockSpec((tm, 5), lambda p, i: (i, 0)), x_spec]
        args = (w_stack.astype(compute_dtype), b_stack.astype(jnp.float32), mp, x_stack)

    out = pl.pallas_call(
        kernel,
        out_shape=jax.ShapeDtypeStruct((3, M_pad, H_out), out_dtype),
        grid_spec=pltpu.PrefetchScalarGridSpec(
            num_scalar_prefetch=0,
            grid=(3, M_pad // tm),
            in_specs=in_specs,
            out_specs=o_spec,
        ),
        compiler_params=pltpu.CompilerParams(
            dimension_semantics=("arbitrary", "parallel")),
    )(*args)
    return out[:, :M, :]


def attention(q3, k3, v3, bias, heads, *, batch_tile=None):
    """q3/k3/v3: (B, S, H) bf16; bias: (B, S, S) additive (0 keep / -1e5 masked)."""
    B, S, H = q3.shape
    bb = B if batch_tile is None else batch_tile     # demo: one block, grid=(1,)
    kern = functools.partial(_attn_kernel, heads=heads)
    return pl.pallas_call(
        kern,
        out_shape=jax.ShapeDtypeStruct((B, S, H), q3.dtype),
        grid_spec=pltpu.PrefetchScalarGridSpec(
            num_scalar_prefetch=0,
            grid=(B // bb,),
            in_specs=[
                pl.BlockSpec((bb, S, H), lambda b: (b, 0, 0)),
                pl.BlockSpec((bb, S, H), lambda b: (b, 0, 0)),
                pl.BlockSpec((bb, S, H), lambda b: (b, 0, 0)),
                pl.BlockSpec((bb, S, S), lambda b: (b, 0, 0)),
            ],
            out_specs=pl.BlockSpec((bb, S, H), lambda b: (b, 0, 0)),
        ),
        compiler_params=pltpu.CompilerParams(dimension_semantics=("parallel",)),
    )(q3, k3, v3, bias)


# ---------------------------------------------------------------------------
# Mask construction (plain glue, static)
# ---------------------------------------------------------------------------
def build_node_masks(one_st_len, st_num):
    """Per-position one-hot group masks, row-major: (S, 5) with columns s,r,o,a,v."""
    L = one_st_len
    m = np.zeros((L, 5), np.float32)
    m[0, 0] = 1.0
    m[1, 1] = 1.0
    m[2, 2] = 1.0
    m[3::2, 3] = 1.0
    m[4::2, 4] = 1.0
    return jnp.asarray(np.tile(m, (st_num, 1)))          # (L*st_num, 5)


def build_remove_keep(seq_len):
    """Static (S, S) keep pattern replicating the remove_mask loop of the module."""
    keep = np.ones((seq_len, seq_len), bool)
    for i in range(3, seq_len, 2):
        if i == 3:
            keep[i:i + 2, i + 2:] = False
        elif i == seq_len - 2:
            keep[i:i + 2, 3:i] = False
        else:
            keep[i:i + 2, i + 2:] = False
            keep[i:i + 2, 3:i] = False
    return keep


# ---------------------------------------------------------------------------
# Full forward (use_edge=False path)
# ---------------------------------------------------------------------------
def multi_head_attention_forward(query, key, value, graph, params, *, heads, use_node,
                                 one_st_len, remove_mask,
                                 compute_dtype=jnp.bfloat16):
    B, S, H = query.shape
    dh = H // heads
    scale = 1.0 / math.sqrt(dh)

    # Stack projection params; fold 1/sqrt(dh) into the query slot (exact).
    if use_node:
        masks_S5 = build_node_masks(one_st_len, S // one_st_len)   # (S, 5)
        row_masks = jnp.tile(masks_S5, (B, 1))                     # (B*S, 5)
        w_stack = jnp.stack([params["query"]["w_cat_t"] * scale,
                             params["key"]["w_cat_t"],
                             params["value"]["w_cat_t"]])          # (3, H, 5H)
        b_stack = jnp.stack([params["query"]["b_sum"] * scale,
                             params["key"]["b_sum"],
                             params["value"]["b_sum"]])[:, None, :]
    else:
        row_masks = None
        w_stack = jnp.stack([params["query"]["w_t"] * scale,
                             params["key"]["w_t"],
                             params["value"]["w_t"]])              # (3, H, H)
        b_stack = jnp.stack([params["query"]["b"] * scale,
                             params["key"]["b"],
                             params["value"]["b"]])[:, None, :]

    x_list = [query.reshape(B * S, H), key.reshape(B * S, H), value.reshape(B * S, H)]
    qkv = fused_prepare(x_list, w_stack, b_stack, row_masks,
                        compute_dtype=compute_dtype, out_dtype=compute_dtype)
    q3 = qkv[0].reshape(B, S, H)          # natural layout; head split is a lane
    k3 = qkv[1].reshape(B, S, H)          # slice inside the attention kernel
    v3 = qkv[2].reshape(B, S, H)

    # Additive mask bias: 0 = keep, -1e5 = masked; bf16 halves mask DMA bytes.
    mask = graph.astype(jnp.float32)
    if remove_mask:
        keep = jnp.asarray(build_remove_keep(S), jnp.float32)
        mask = mask * keep[None]
    bias = ((mask - 1.0) * 100000.0).astype(compute_dtype)

    ctx = attention(q3, k3, v3, bias, heads)                       # (B, S, H) bf16

    # Output projection (dropout is the eval-mode identity); final result f32.
    out = linear_2d(ctx.reshape(B * S, H), params["out"]["w_t"], params["out"]["b"],
                    compute_dtype=compute_dtype, out_dtype=jnp.float32)
    return out.reshape(B, S, H)


# ---------------------------------------------------------------------------
# Parameter construction (PyTorch nn.Linear default init)
# ---------------------------------------------------------------------------
def init_linear_params(key, h_in, h_out, bias=True):
    kw, kb = jax.random.split(key)
    bound = 1.0 / math.sqrt(h_in)
    w = jax.random.uniform(kw, (h_out, h_in), jnp.float32, -bound, bound)
    b = (jax.random.uniform(kb, (h_out,), jnp.float32, -bound, bound)
         if bias else jnp.zeros((h_out,), jnp.float32))
    return w, b


def make_node_proj_params(key, H):
    keys = jax.random.split(key, 5)
    ws, bs = zip(*[init_linear_params(kk, H, H, True) for kk in keys])
    w_t_list = [w.T for w in ws]
    return dict(w_t_list=list(w_t_list), b_list=list(bs),
                w_cat_t=jnp.concatenate(w_t_list, axis=1),          # (H, 5H)
                b_sum=jnp.stack(list(bs)).sum(0))                   # (H,)


def make_linear_proj_params(key, H, bias):
    w, b = init_linear_params(key, H, H, bias)
    return dict(w_t=w.T, b=b)


# ---------------------------------------------------------------------------
# Pure-JAX reference (mirrors the PyTorch module)
# ---------------------------------------------------------------------------
def ref_prepare(x, p, use_node, masks_S5):
    if use_node:
        acc = jnp.zeros(x.shape, jnp.float32)
        for k in range(5):
            xm = x * masks_S5[:, k][None, :, None]
            acc = acc + xm @ p["w_t_list"][k] + p["b_list"][k]
        return acc
    return x @ p["w_t"] + p["b"]


def ref_mha(query, key, value, graph, params, *, heads, use_node, one_st_len,
            remove_mask):
    B, S, H = query.shape
    dh = H // heads
    scale = 1.0 / math.sqrt(dh)
    masks_S5 = build_node_masks(one_st_len, S // one_st_len) if use_node else None
    q = ref_prepare(query, params["query"], use_node, masks_S5).reshape(B, S, heads, dh)
    k = ref_prepare(key, params["key"], use_node, masks_S5).reshape(B, S, heads, dh)
    v = ref_prepare(value, params["value"], use_node, masks_S5).reshape(B, S, heads, dh)
    scores = jnp.einsum("bqhd,bkhd->bhqk", q, k) * scale
    mask = jnp.broadcast_to(graph[:, None].astype(bool), (B, heads, S, S))
    if remove_mask:
        keep = jnp.asarray(build_remove_keep(S), bool)
        mask = jnp.logical_and(mask, keep[None, None])
    scores = jnp.where(mask, scores, -100000.0)
    attn = jax.nn.softmax(scores, axis=-1)
    x = jnp.einsum("bhqk,bkhd->bqhd", attn, v).reshape(B, S, H)
    return x @ params["out"]["w_t"] + params["out"]["b"]


# ---------------------------------------------------------------------------
if __name__ == "__main__":
    key = jax.random.PRNGKey(0)

    hidden_dim = 128        # lane-dense blocks (128 = one full lane width)
    heads = 4
    one_st_len = 5          # 3 + 2*1 (masks a/v need (one_st_len - 3) even)
    st_num = 2
    B = 2
    S = one_st_len * st_num  # 10

    keys = jax.random.split(key, 12)
    q_in = jax.random.normal(keys[0], (B, S, hidden_dim), jnp.float32)
    k_in = jax.random.normal(keys[1], (B, S, hidden_dim), jnp.float32)
    v_in = jax.random.normal(keys[2], (B, S, hidden_dim), jnp.float32)
    graph = jax.random.bernoulli(keys[3], 0.7, (B, S, S))
    graph = jnp.logical_or(graph, jnp.eye(S, dtype=bool)[None])   # avoid empty rows

    out_w, out_b = init_linear_params(keys[4], hidden_dim, hidden_dim, True)
    params_node = dict(query=make_node_proj_params(keys[5], hidden_dim),
                       key=make_node_proj_params(keys[6], hidden_dim),
                       value=make_node_proj_params(keys[7], hidden_dim),
                       out=dict(w_t=out_w.T, b=out_b))
    params_lin = dict(query=make_linear_proj_params(keys[8], hidden_dim, bias=False),
                      key=make_linear_proj_params(keys[9], hidden_dim, bias=False),
                      value=make_linear_proj_params(keys[10], hidden_dim, bias=True),
                      out=dict(w_t=out_w.T, b=out_b))

    # --- sub-kernel check: fused node-path projection (unscaled) vs reference ---
    masks_S5 = build_node_masks(one_st_len, st_num)
    row_masks = jnp.tile(masks_S5, (B, 1))
    w_stack = jnp.stack([params_node[n]["w_cat_t"] for n in ("query", "key", "value")])
    b_stack = jnp.stack([params_node[n]["b_sum"]
                         for n in ("query", "key", "value")])[:, None, :]
    x_list = [q_in.reshape(B * S, hidden_dim), k_in.reshape(B * S, hidden_dim),
              v_in.reshape(B * S, hidden_dim)]
    prep = fused_prepare(x_list, w_stack, b_stack, row_masks)
    jax.block_until_ready(prep)
    prep_q = np.asarray(prep[0].astype(jnp.float32)).reshape(B, S, hidden_dim)
    prep_ref = np.asarray(ref_prepare(q_in, params_node["query"], True, masks_S5))
    np.testing.assert_allclose(prep_q, prep_ref, rtol=2e-2, atol=2e-2)

    # --- full forward, use_node=True, remove_mask=True ---
    out1 = multi_head_attention_forward(q_in, k_in, v_in, graph, params_node,
                                        heads=heads, use_node=True,
                                        one_st_len=one_st_len, remove_mask=True)
    jax.block_until_ready(out1)
    ref1 = ref_mha(q_in, k_in, v_in, graph, params_node, heads=heads, use_node=True,
                   one_st_len=one_st_len, remove_mask=True)
    assert out1.shape == (B, S, hidden_dim)
    np.testing.assert_allclose(np.asarray(out1), np.asarray(ref1),
                               rtol=3e-2, atol=3e-2)

    # --- full forward, use_node=False (q/k bias=False, v bias=True) ---
    out2 = multi_head_attention_forward(q_in, k_in, v_in, graph, params_lin,
                                        heads=heads, use_node=False,
                                        one_st_len=one_st_len, remove_mask=False)
    jax.block_until_ready(out2)
    ref2 = ref_mha(q_in, k_in, v_in, graph, params_lin, heads=heads, use_node=False,
                   one_st_len=one_st_len, remove_mask=False)
    assert out2.shape == (B, S, hidden_dim)
    np.testing.assert_allclose(np.asarray(out2), np.asarray(ref2),
                               rtol=3e-2, atol=3e-2)

    print("KERNEL_OK")
</pallas_src>

<mosaic_0001>
module attributes {stable_mosaic.version = 11 : i64} {
  func.func @_node_prepare_kernel(%arg0: i32, %arg1: i32, %arg2: memref<1x128x640xbf16, #tpu.memory_space<vmem>>, %arg3: memref<1x1x128xf32, #tpu.memory_space<vmem>>, %arg4: memref<24x5xf32, #tpu.memory_space<vmem>>, %arg5: memref<1x24x128xbf16, #tpu.memory_space<vmem>>, %arg6: memref<1x24x128xbf16, #tpu.memory_space<vmem>>) attributes {dimension_semantics = [#tpu.dimension_semantics<arbitrary>, #tpu.dimension_semantics<parallel>], iteration_bounds = array<i64: 3, 1>, scalar_prefetch = 0 : i64, scratch_operands = 0 : i64, tpu.core_type = #tpu.core_type<tc>, window_params = [{transform_indices = @transform_0, window_bounds = array<i64: 1, 128, 640>}, {transform_indices = @transform_1, window_bounds = array<i64: 1, 1, 128>}, {transform_indices = @transform_2, window_bounds = array<i64: 24, 5>}, {transform_indices = @transform_3, window_bounds = array<i64: 1, 24, 128>}, {transform_indices = @transform_4, window_bounds = array<i64: 1, 24, 128>}]} {
    %c0 = arith.constant 0 : index
    %c0_0 = arith.constant 0 : index
    %c0_1 = arith.constant 0 : index
    %0 = vector.load %arg5[%c0, %c0_0, %c0_1] : memref<1x24x128xbf16, #tpu.memory_space<vmem>>, vector<1x24x128xbf16>
    %1 = vector.shape_cast %0 : vector<1x24x128xbf16> to vector<24x128xbf16>
    %c0_2 = arith.constant 0 : index
    %c0_3 = arith.constant 0 : index
    %2 = vector.load %arg4[%c0_2, %c0_3] : memref<24x5xf32, #tpu.memory_space<vmem>>, vector<24x5xf32>
    %3 = vector.extract_strided_slice %2 {offsets = [0, 0], sizes = [24, 1], strides = [1, 1]} : vector<24x5xf32> to vector<24x1xf32>
    %c0_4 = arith.constant 0 : index
    %c0_5 = arith.constant 0 : index
    %c0_6 = arith.constant 0 : index
    %4 = vector.load %arg2[%c0_4, %c0_5, %c0_6] : memref<1x128x640xbf16, #tpu.memory_space<vmem>>, vector<1x128x128xbf16>
    %5 = vector.shape_cast %4 : vector<1x128x128xbf16> to vector<128x128xbf16>
    %cst = arith.constant dense<0.000000e+00> : vector<24x128xf32>
    %6 = tpu.matmul %1, %5, %cst {dimension_numbers = #tpu.dot_dimension_numbers<[1], [0], [0], [1], [0, 0, 1, 1], [], []>} : vector<24x128xbf16>, vector<128x128xbf16>, vector<24x128xf32> -> vector<24x128xf32>
    %7 = vector.broadcast %3 : vector<24x1xf32> to vector<24x128xf32>
    %8 = arith.mulf %7, %6 : vector<24x128xf32>
    %c0_7 = arith.constant 0 : index
    %c0_8 = arith.constant 0 : index
    %c128 = arith.constant 128 : index
    %9 = vector.load %arg2[%c0_7, %c0_8, %c128] : memref<1x128x640xbf16, #tpu.memory_space<vmem>>, vector<1x128x128xbf16>
    %10 = vector.shape_cast %9 : vector<1x128x128xbf16> to vector<128x128xbf16>
    %cst_9 = arith.constant dense<0.000000e+00> : vector<24x128xf32>
    %11 = tpu.matmul %1, %10, %cst_9 {dimension_numbers = #tpu.dot_dimension_numbers<[1], [0], [0], [1], [0, 0, 1, 1], [], []>} : vector<24x128xbf16>, vector<128x128xbf16>, vector<24x128xf32> -> vector<24x128xf32>
    %12 = vector.extract_strided_slice %2 {offsets = [0, 1], sizes = [24, 1], strides = [1, 1]} : vector<24x5xf32> to vector<24x1xf32>
    %13 = vector.broadcast %12 : vector<24x1xf32> to vector<24x128xf32>
    %14 = arith.mulf %13, %11 : vector<24x128xf32>
    %15 = arith.addf %8, %14 : vector<24x128xf32>
    %c0_10 = arith.constant 0 : index
    %c0_11 = arith.constant 0 : index
    %c256 = arith.constant 256 : index
    %16 = vector.load %arg2[%c0_10, %c0_11, %c256] : memref<1x128x640xbf16, #tpu.memory_space<vmem>>, vector<1x128x128xbf16>
    %17 = vector.shape_cast %16 : vector<1x128x128xbf16> to vector<128x128xbf16>
    %cst_12 = arith.constant dense<0.000000e+00> : vector<24x128xf32>
    %18 = tpu.matmul %1, %17, %cst_12 {dimension_numbers = #tpu.dot_dimension_numbers<[1], [0], [0], [1], [0, 0, 1, 1], [], []>} : vector<24x128xbf16>, vector<128x128xbf16>, vector<24x128xf32> -> vector<24x128xf32>
    %19 = vector.extract_strided_slice %2 {offsets = [0, 2], sizes = [24, 1], strides = [1, 1]} : vector<24x5xf32> to vector<24x1xf32>
    %20 = vector.broadcast %19 : vector<24x1xf32> to vector<24x128xf32>
    %21 = arith.mulf %20, %18 : vector<24x128xf32>
    %22 = arith.addf %15, %21 : vector<24x128xf32>
    %c0_13 = arith.constant 0 : index
    %c0_14 = arith.constant 0 : index
    %c384 = arith.constant 384 : index
    %23 = vector.load %arg2[%c0_13, %c0_14, %c384] : memref<1x128x640xbf16, #tpu.memory_space<vmem>>, vector<1x128x128xbf16>
    %24 = vector.shape_cast %23 : vector<1x128x128xbf16> to vector<128x128xbf16>
    %cst_15 = arith.constant dense<0.000000e+00> : vector<24x128xf32>
    %25 = tpu.matmul %1, %24, %cst_15 {dimension_numbers = #tpu.dot_dimension_numbers<[1], [0], [0], [1], [0, 0, 1, 1], [], []>} : vector<24x128xbf16>, vector<128x128xbf16>, vector<24x128xf32> -> vector<24x128xf32>
    %26 = vector.extract_strided_slice %2 {offsets = [0, 3], sizes = [24, 1], strides = [1, 1]} : vector<24x5xf32> to vector<24x1xf32>
    %27 = vector.broadcast %26 : vector<24x1xf32> to vector<24x128xf32>
    %28 = arith.mulf %27, %25 : vector<24x128xf32>
    %29 = arith.addf %22, %28 : vector<24x128xf32>
    %c0_16 = arith.constant 0 : index
    %c0_17 = arith.constant 0 : index
    %c512 = arith.constant 512 : index
    %30 = vector.load %arg2[%c0_16, %c0_17, %c512] : memref<1x128x640xbf16, #tpu.memory_space<vmem>>, vector<1x128x128xbf16>
    %31 = vector.shape_cast %30 : vector<1x128x128xbf16> to vector<128x128xbf16>
    %cst_18 = arith.constant dense<0.000000e+00> : vector<24x128xf32>
    %32 = tpu.matmul %1, %31, %cst_18 {dimension_numbers = #tpu.dot_dimension_numbers<[1], [0], [0], [1], [0, 0, 1, 1], [], []>} : vector<24x128xbf16>, vector<128x128xbf16>, vector<24x128xf32> -> vector<24x128xf32>
    %33 = vector.extract_strided_slice %2 {offsets = [0, 4], sizes = [24, 1], strides = [1, 1]} : vector<24x5xf32> to vector<24x1xf32>
    %34 = vector.broadcast %33 : vector<24x1xf32> to vector<24x128xf32>
    %35 = arith.mulf %34, %32 : vector<24x128xf32>
    %36 = arith.addf %29, %35 : vector<24x128xf32>
    %c0_19 = arith.constant 0 : index
    %c0_20 = arith.constant 0 : index
    %c0_21 = arith.constant 0 : index
    %37 = vector.load %arg3[%c0_19, %c0_20, %c0_21] : memref<1x1x128xf32, #tpu.memory_space<vmem>>, vector<1x1x128xf32>
    %38 = vector.shape_cast %37 : vector<1x1x128xf32> to vector<1x128xf32>
    %39 = vector.broadcast %38 : vector<1x128xf32> to vector<24x128xf32>
    %40 = arith.addf %36, %39 : vector<24x128xf32>
    %41 = arith.truncf %40 : vector<24x128xf32> to vector<24x128xbf16>
    %c0_22 = arith.constant 0 : index
    %c0_23 = arith.constant 0 : index
    %c0_24 = arith.constant 0 : index
    %42 = vector.load %arg6[%c0_22, %c0_23, %c0_24] : memref<1x24x128xbf16, #tpu.memory_space<vmem>>, vector<1x24x128xbf16>
    %43 = vector.shape_cast %42 : vector<1x24x128xbf16> to vector<24x128xbf16>
    %44 = vector.shape_cast %41 : vector<24x128xbf16> to vector<1x24x128xbf16>
    tpu.vector_store %arg6[%c0_22, %c0_23, %c0_24], %44 {strides = array<i32>} : memref<1x24x128xbf16, #tpu.memory_space<vmem>>, vector<1x24x128xbf16>,
    return
  }
  func.func @transform_0(%arg0: i32, %arg1: i32) -> (i32, i32, i32) {
    %c0_i32 = arith.constant 0 : i32
    %c0_i32_0 = arith.constant 0 : i32
    %c0_i32_1 = arith.constant 0 : i32
    return %arg0, %c0_i32, %c0_i32_0 : i32, i32, i32
  }
  func.func @transform_1(%arg0: i32, %arg1: i32) -> (i32, i32, i32) {
    %c0_i32 = arith.constant 0 : i32
    %c0_i32_0 = arith.constant 0 : i32
    %c0_i32_1 = arith.constant 0 : i32
    return %arg0, %c0_i32, %c0_i32_0 : i32, i32, i32
  }
  func.func @transform_2(%arg0: i32, %arg1: i32) -> (i32, i32) {
    %c0_i32 = arith.constant 0 : i32
    %c0_i32_0 = arith.constant 0 : i32
    return %arg1, %c0_i32 : i32, i32
  }
  func.func @transform_3(%arg0: i32, %arg1: i32) -> (i32, i32, i32) {
    %c0_i32 = arith.constant 0 : i32
    %c0_i32_0 = arith.constant 0 : i32
    return %arg0, %arg1, %c0_i32 : i32, i32, i32
  }
  func.func @transform_4(%arg0: i32, %arg1: i32) -> (i32, i32, i32) {
    %c0_i32 = arith.constant 0 : i32
    %c0_i32_0 = arith.constant 0 : i32
    return %arg0, %arg1, %c0_i32 : i32, i32, i32
  }
}

</mosaic_0001>

<llo_original>
// kernel: tpu_custom_call.1
$region0: #{tpu_custom_call.1}
  #allocation0 [shape = 'u32[]', space=smem, size = 0x4, offset = 0x4, fixed_abs, tag = 'smem constant byte address 0x4 - core index']
  #allocation1 [shape = 'u32[144,128]{1,0:T(1,128)}', space=vmem, size = 0x12000, scoped, tag = 'internal scratch']
  %s0 = inlined_call_operand.hbm [shape: bf16[3,128,640], index: 0, kind: input, shape index: {}]
  %s1 = inlined_call_operand.hbm [shape: f32[3,1,128], index: 1, kind: input, shape index: {}]
  %s2 = inlined_call_operand.vmem [shape: f32[24,5], index: 2, kind: input, shape index: {}]
  %s3 = inlined_call_operand.vmem [shape: bf16[3,24,128], index: 3, kind: input, shape index: {}]
  %s4 = inlined_call_operand.hbm [shape: bf16[3,24,128], index: 4, kind: output, shape index: {}]
  %s5 = sld [smem:[#allocation0]]
  $region57: #{tpu_custom_call.1} parent=0
    _
  %s7 = ssub.s32 1, %s5
  %s8 = scalar_select 0, %s7, %s5
  $region1: #{tpu_custom_call.1} parent=0
    #allocation2 [shape = 'u8[327680]{0}', space=vmem, size = 0x50000, scoped, tag = 'input window, operand 0']
    #allocation3 [shape = 's32[2]{0}', space=sflag, size = 0x8, scoped, tag = 'scoped memory for tpu_custom_call.1']
    #allocation4 [shape = 's32[2]{0}', space=sflag, size = 0x8, scoped, tag = 'scoped memory for tpu_custom_call.1']
    #allocation5 [shape = 'u8[1024]{0}', space=vmem, size = 0x400, scoped, tag = 'input window, operand 1']
    #allocation6 [shape = 's32[2]{0}', space=sflag, size = 0x8, scoped, tag = 'scoped memory for tpu_custom_call.1']
    #allocation7 [shape = 'u8[12288]{0}', space=vmem, size = 0x3000, scoped, tag = 'output window, operand 0']
    %9 = vsyncpa [#allocation3], 0
    %s10 = scalar_lea.sflag [#allocation3], 1
    %11 = vsyncpa %s10, 0
    %12 = vsyncpa [#allocation6], 0
    %s13 = scalar_lea.sflag [#allocation6], 1
    %14 = vsyncpa %s13, 0
    %15 = vsyncpa [#allocation4], 0
    %s16 = scalar_lea.sflag [#allocation4], 1
    %17 = vsyncpa %s16, 0
    loop: start=0, step=1, limit=5
    $region2: #{tpu_custom_call.1} parent=1 // loop_pre_header
      _
    $region3: #{tpu_custom_call.1} parent=1 // loop_header
      %s19 = sphi 0, %s23
      %p20 = scmp.ge.s32.totalorder %s19, 5
      %s26 = sphi 0, %s38
      %s27 = sphi 0, %s34
      %s28 = sphi 0, %s26
      %s29 = sphi 0, %s27
      %s30 = sphi 0, %s28
      %s31 = sphi 0, %s29
      %s41 = sphi 0, %s43
      %s44 = sphi 0, %s41
      %s45 = sphi 0, %s44
      %s61 = sphi 0, %s45
      %s67 = sphi 0, %s69
      %s70 = sphi 0, %s67
      %s71 = sphi 0, %s70
      %s87 = sphi 0, %s71
      %s93 = sphi 0, %s95
      %s96 = sphi 0, %s93
      %s97 = sphi 0, %s96
      %s113 = sphi 0, %s97
      %s121 = sphi 0, %s123
      %s124 = sphi 0, %s121
      %s125 = sphi 0, %s124
      %s141 = sphi 0, %s125
      %s149 = sphi 0, %s151
      %s152 = sphi 0, %s149
      %s153 = sphi 0, %s152
      %s169 = sphi 0, %s153
    $region4: #{tpu_custom_call.1} parent=1 // loop_header_branch
      %22 = sbr.rel (%p20) target = $region8
    $region5: #{tpu_custom_call.1} parent=1 // loop_body
      %s24 = ssub.s32 %s19, 1
      %s25 = ssub.s32 %s19, 2
      %s32 = sadd.s32 1, %s27
      %p33 = scmp.ge.s32.totalorder %s32, 1
      %s34 = scalar_select %p33, 0, %s32
      %s35 = sadd.s32 1, %s26
      %s36 = scalar_select %p33, %s35, %s26
      %p37 = scmp.ge.s32.totalorder %s36, 3
      %s38 = scalar_select %p37, 0, %s36
      %s39 = ssub.s32 %s26, %s38
      %p40 = scmp.eq.s32.totalorder %s39, 0
      %s42 = sadd.s32 %s41, 1
      %s43 = scalar_select %p40, %s41, %s42
      %p46 = pneg %p40
      %p47 = scmp.eq.s32.totalorder %s19, 2
      %p48 = por %p46, %p47
      %p49 = scmp.ne.s32.totalorder %s41, %s44
      %p50 = scmp.eq.s32.totalorder %s19, 0
      %p51 = por %p49, %p50
      %p52 = scmp.ne.s32.totalorder %s41, %s44
      %p53 = scmp.eq.s32.totalorder %s24, 2
      %p54 = por %p52, %p53
      %p55 = scmp.ne.s32.totalorder %s44, %s45
      %p56 = scmp.eq.s32.totalorder %s24, 0
      %p57 = por %p55, %p56
      %p58 = scmp.ne.s32.totalorder %s44, %s45
      %p59 = scmp.eq.s32.totalorder %s25, 2
      %p60 = por %p58, %p59
      %p62 = scmp.ne.s32.totalorder %s45, %s61
      %p63 = scmp.eq.s32.totalorder %s25, 0
      %p64 = por %p62, %p63
      %s65 = ssub.s32 %s26, %s38
      %p66 = scmp.eq.s32.totalorder %s65, 0
      %s68 = sadd.s32 %s67, 1
      %s69 = scalar_select %p66, %s67, %s68
      %p72 = pneg %p66
      %p73 = scmp.eq.s32.totalorder %s19, 2
      %p74 = por %p72, %p73
      %p75 = scmp.ne.s32.totalorder %s67, %s70
      %p76 = scmp.eq.s32.totalorder %s19, 0
      %p77 = por %p75, %p76
      %p78 = scmp.ne.s32.totalorder %s67, %s70
      %p79 = scmp.eq.s32.totalorder %s24, 2
      %p80 = por %p78, %p79
      %p81 = scmp.ne.s32.totalorder %s70, %s71
      %p82 = scmp.eq.s32.totalorder %s24, 0
      %p83 = por %p81, %p82
      %p84 = scmp.ne.s32.totalorder %s70, %s71
      %p85 = scmp.eq.s32.totalorder %s25, 2
      %p86 = por %p84, %p85
      %p88 = scmp.ne.s32.totalorder %s71, %s87
      %p89 = scmp.eq.s32.totalorder %s25, 0
      %p90 = por %p88, %p89
      %s91 = ssub.s32 %s27, %s34
      %p92 = scmp.eq.s32.totalorder %s91, 0
      %s94 = sadd.s32 %s93, 1
      %s95 = scalar_select %p92, %s93, %s94
      %p98 = pneg %p92
      %p99 = scmp.eq.s32.totalorder %s19, 2
      %p100 = por %p98, %p99
      %p101 = scmp.ne.s32.totalorder %s93, %s96
      %p102 = scmp.eq.s32.totalorder %s19, 0
      %p103 = por %p101, %p102
      %p104 = scmp.ne.s32.totalorder %s93, %s96
      %p105 = scmp.eq.s32.totalorder %s24, 2
      %p106 = por %p104, %p105
      %p107 = scmp.ne.s32.totalorder %s96, %s97
      %p108 = scmp.eq.s32.totalorder %s24, 0
      %p109 = por %p107, %p108
      %p110 = scmp.ne.s32.totalorder %s96, %s97
      %p111 = scmp.eq.s32.totalorder %s25, 2
      %p112 = por %p110, %p111
      %p114 = scmp.ne.s32.totalorder %s97, %s113
      %p115 = scmp.eq.s32.totalorder %s25, 0
      %p116 = por %p114, %p115
      %s117 = ssub.s32 %s26, %s38
      %s118 = ssub.s32 %s27, %s34
      %s119 = sor.u32 %s117, %s118
      %p120 = scmp.eq.s32.totalorder %s119, 0
      %s122 = sadd.s32 %s121, 1
      %s123 = scalar_select %p120, %s121, %s122
      %p126 = pneg %p120
      %p127 = scmp.eq.s32.totalorder %s19, 2
      %p128 = por %p126, %p127
      %p129 = scmp.ne.s32.totalorder %s121, %s124
      %p130 = scmp.eq.s32.totalorder %s19, 0
      %p131 = por %p129, %p130
      %p132 = scmp.ne.s32.totalorder %s121, %s124
      %p133 = scmp.eq.s32.totalorder %s24, 2
      %p134 = por %p132, %p133
      %p135 = scmp.ne.s32.totalorder %s124, %s125
      %p136 = scmp.eq.s32.totalorder %s24, 0
      %p137 = por %p135, %p136
      %p138 = scmp.ne.s32.totalorder %s124, %s125
      %p139 = scmp.eq.s32.totalorder %s25, 2
      %p140 = por %p138, %p139
      %p142 = scmp.ne.s32.totalorder %s125, %s141
      %p143 = scmp.eq.s32.totalorder %s25, 0
      %p144 = por %p142, %p143
      %s145 = ssub.s32 %s26, %s38
      %s146 = ssub.s32 %s27, %s34
      %s147 = sor.u32 %s145, %s146
      %p148 = scmp.eq.s32.totalorder %s147, 0
      %s150 = sadd.s32 %s149, 1
      %s151 = scalar_select %p148, %s149, %s150
      %p154 = pneg %p148
      %p155 = scmp.eq.s32.totalorder %s19, 2
      %p156 = por %p154, %p155
      %p157 = scmp.ne.s32.totalorder %s149, %s152
      %p158 = scmp.eq.s32.totalorder %s19, 0
      %p159 = por %p157, %p158
      %p160 = scmp.ne.s32.totalorder %s149, %s152
      %p161 = scmp.eq.s32.totalorder %s24, 2
      %p162 = por %p160, %p161
      %p163 = scmp.ne.s32.totalorder %s152, %s153
      %p164 = scmp.eq.s32.totalorder %s24, 0
      %p165 = por %p163, %p164
      %p166 = scmp.ne.s32.totalorder %s152, %s153
      %p167 = scmp.eq.s32.totalorder %s25, 2
      %p168 = por %p166, %p167
      %p170 = scmp.ne.s32.totalorder %s153, %s169
      %p171 = scmp.eq.s32.totalorder %s25, 0
      %p172 = por %p170, %p171
      %p173 = scmp.le.s32.totalorder 1, %s19
      %p174 = scmp.lt.s32.totalorder %s19, 4
      %p175 = pnand %p173, %p174
      %p176 = pneg %p175
      // Predicated region
      $region9: #{tpu_custom_call.1} parent=5 // pred_check
        _
      $region10: #{tpu_custom_call.1} parent=5 // pred_check_branch
        %178 = sbr.rel (%p175) target = $region12
      $region11: #{tpu_custom_call.1} parent=5 // pred_region
        %s179 = ssub.s32 %s19, 1
        // Predicated region
        $region13: #{tpu_custom_call.1} parent=11 // pred_check
          %p180 = pneg %p109
        $region14: #{tpu_custom_call.1} parent=11 // pred_check_branch
          %182 = sbr.rel (%p180) target = $region16
        $region15: #{tpu_custom_call.1} parent=11 // pred_region
          %s183 = smul.u32 3, %s29
          %p184 = scmp.lt.s32.totalorder %s183, 2
          %s185 = scalar_select %p184, %s183, 2
          %s186 = smul.addr %s185, 8
          %s187 = scalar_lea.vmem %s2, %s186
          %s188 = smul.u32 3, %s29
        $region16: #{tpu_custom_call.1} parent=11 // pred_fallthru
          _
      $region12: #{tpu_custom_call.1} parent=5 // pred_fallthru
        _
      %p189 = scmp.lt.s32.totalorder %s19, 3
      // Predicated region
      $region17: #{tpu_custom_call.1} parent=5 // pred_check
        %p190 = pneg %p189
      $region18: #{tpu_custom_call.1} parent=5 // pred_check_branch
        %192 = sbr.rel (%p190) target = $region20
      $region19: #{tpu_custom_call.1} parent=5 // pred_region
        // Predicated region
        $region21: #{tpu_custom_call.1} parent=19 // pred_check
          %p193 = pneg %p51
        $region22: #{tpu_custom_call.1} parent=19 // pred_check_branch
          %195 = sbr.rel (%p193) target = $region24
        $region23: #{tpu_custom_call.1} parent=19 // pred_region
          %s196 = sand.u32 %s41, 1
          %s197 = scalar_lea.sflag [#allocation3], %s196
          %s198 = sand.u32 %s41, 1
          %s199 = smul.addr %s198, 320
          %s200 = scalar_lea.vmem [#allocation2], %s199
          %s202 = ssub.s32 5120, 5120
          %203 = vsyncadd %s197, %s202
          %s204 = smul.addr %s26, 80
          %s205 = smul.addr %s204, 64
          %s206 = scalar_lea.hbm %s0, %s205
          %s207 = sshll.u32 %s200, 4
          %s208 = int_to_ptr.vmem [resolvable:$true] %s207
          %213 = dma.hbm_to_vmem [thread:$0]  %s206, 5120, %s208, %s197, 320, 320, 20
        $region24: #{tpu_custom_call.1} parent=19 // pred_fallthru
          _
        // Predicated region
        $region25: #{tpu_custom_call.1} parent=19 // pred_check
          %p214 = pneg %p77
        $region26: #{tpu_custom_call.1} parent=19 // pred_check_branch
          %216 = sbr.rel (%p214) target = $region28
        $region27: #{tpu_custom_call.1} parent=19 // pred_region
          %s217 = sand.u32 %s67, 1
          %s218 = scalar_lea.sflag [#allocation6], %s217
          %s219 = sand.u32 %s67, 1
          %s220 = scalar_lea.vmem [#allocation5], %s219
          %s222 = ssub.s32 16, 16
          %223 = vsyncadd %s218, %s222
          %s224 = smul.addr %s26, 16
          %s225 = scalar_lea.hbm %s1, %s224
          %s227 = sshll.u32 %s220, 4
          %s228 = int_to_ptr.vmem [resolvable:$true] %s227
          %230 = dma.hbm_to_vmem [thread:$0]  %s225, 16, %s228, %s218
        $region28: #{tpu_custom_call.1} parent=19 // pred_fallthru
          _
        // Predicated region
        $region29: #{tpu_custom_call.1} parent=19 // pred_check
          %p231 = pneg %p131
        $region30: #{tpu_custom_call.1} parent=19 // pred_check_branch
          %233 = sbr.rel (%p231) target = $region32
        $region31: #{tpu_custom_call.1} parent=19 // pred_region
          %s234 = smul.u32 3, %s27
          %p235 = scmp.lt.s32.totalorder %s26, 2
          %s236 = scalar_select %p235, %s26, 2
          %p237 = scmp.lt.s32.totalorder %s234, 2
          %s238 = scalar_select %p237, %s234, 2
          %s239 = smul.addr %s236, 3
          %s240 = sadd.s32 %s238, %s239
          %s241 = smul.addr %s240, 4
          %s242 = scalar_lea.vmem %s3, %s241
          %s243 = smul.u32 3, %s27
        $region32: #{tpu_custom_call.1} parent=19 // pred_fallthru
          _
      $region20: #{tpu_custom_call.1} parent=5 // pred_fallthru
        _
      %p244 = scmp.le.s32.totalorder 1, %s19
      %p245 = scmp.lt.s32.totalorder %s19, 4
      %p246 = pnand %p244, %p245
      %p247 = pneg %p246
      // Predicated region
      $region33: #{tpu_custom_call.1} parent=5 // pred_check
        _
      $region34: #{tpu_custom_call.1} parent=5 // pred_check_branch
        %249 = sbr.rel (%p246) target = $region36
      $region35: #{tpu_custom_call.1} parent=5 // pred_region
        %s250 = ssub.s32 %s19, 1
        %s251 = sand.u32 %s44, 1
        %s252 = scalar_lea.sflag [#allocation3], %s251
        %s253 = sand.u32 %s44, 1
        %s254 = smul.addr %s253, 320
        %s255 = scalar_lea.vmem [#allocation2], %s254
        // Predicated region
        $region37: #{tpu_custom_call.1} parent=35 // pred_check
          %p256 = pneg %p57
        $region38: #{tpu_custom_call.1} parent=35 // pred_check_branch
          %258 = sbr.rel (%p256) target = $region40
        $region39: #{tpu_custom_call.1} parent=35 // pred_region
          %259 = dma.done %s252, 5120
        $region40: #{tpu_custom_call.1} parent=35 // pred_fallthru
          _
        %s260 = sand.u32 %s70, 1
        %s261 = scalar_lea.sflag [#allocation6], %s260
        %s262 = sand.u32 %s70, 1
        %s263 = scalar_lea.vmem [#allocation5], %s262
        // Predicated region
        $region41: #{tpu_custom_call.1} parent=35 // pred_check
          %p264 = pneg %p83
        $region42: #{tpu_custom_call.1} parent=35 // pred_check_branch
          %266 = sbr.rel (%p264) target = $region44
        $region43: #{tpu_custom_call.1} parent=35 // pred_region
          %267 = dma.done %s261, 16
        $region44: #{tpu_custom_call.1} parent=35 // pred_fallthru
          _
        %s268 = sand.u32 %s44, 1
        %s269 = scalar_lea.sflag [#allocation3], %s268
        %s270 = sand.u32 %s44, 1
        %s271 = smul.addr %s270, 320
        %s272 = scalar_lea.vmem [#allocation2], %s271
        %p273 = pneg %p57
        %p274 = pneg %p54
        %s275 = sand.u32 %s70, 1
        %s276 = scalar_lea.sflag [#allocation6], %s275
        %s277 = sand.u32 %s70, 1
        %s278 = scalar_lea.vmem [#allocation5], %s277
        %p279 = pneg %p83
        %p280 = pneg %p80
        %s281 = smul.u32 3, %s29
        %p282 = scmp.lt.s32.totalorder %s281, 2
        %s283 = scalar_select %p282, %s281, 2
        %s284 = smul.addr %s283, 8
        %s285 = scalar_lea.vmem %s2, %s284
        %p286 = pneg %p109
        %p287 = pneg %p106
        %s288 = smul.u32 3, %s29
        %p289 = scmp.lt.s32.totalorder %s28, 2
        %s290 = scalar_select %p289, %s28, 2
        %p291 = scmp.lt.s32.totalorder %s288, 2
        %s292 = scalar_select %p291, %s288, 2
        %s293 = smul.addr %s290, 3
        %s294 = sadd.s32 %s292, %s293
        %s295 = smul.addr %s294, 4
        %s296 = scalar_lea.vmem %s3, %s295
        %p297 = pneg %p137
        %p298 = pneg %p134
        %p299 = pneg %p165
        %p300 = pneg %p162
        %s301 = sand.u32 %s152, 1
        %s302 = scalar_lea.sflag [#allocation4], %s301
        %s303 = sand.u32 %s152, 1
        %s304 = smul.addr %s303, 12
        %s305 = scalar_lea.vmem [#allocation7], %s304
        %s306 = smul.u32 3, %s29
        %p307 = scmp.lt.s32.totalorder %s306, 2
        %s308 = scalar_select %p307, %s306, 2
        %s309 = smul.addr %s308, 8
        %s310 = scalar_lea.vmem %s2, %s309
        %s311 = smul.u32 3, %s29
        %s312 = smul.u32 3, %s29
        %p313 = scmp.lt.s32.totalorder %s28, 2
        %s314 = scalar_select %p313, %s28, 2
        %p315 = scmp.lt.s32.totalorder %s312, 2
        %s316 = scalar_select %p315, %s312, 2
        %s317 = smul.addr %s314, 3
        %s318 = sadd.s32 %s316, %s317
        %s319 = smul.addr %s318, 4
        %s320 = scalar_lea.vmem %s3, %s319
        %s321 = smul.u32 3, %s29
        %s322 = smul.u32 3, %s29
        %v324 = vld [vmem:[%s320] sm:$0xf]
        %v325 = vld [vmem:[%s320 + $0x4] sm:$0xf]
        %v326 = vld [vmem:[%s320 + $0x8] sm:$0xf]
        %v327 = vld [vmem:[%s310] sm:$0xff]
        %v328 = vld [vmem:[%s310 + $0x8] sm:$0xff]
        %v329 = vld [vmem:[%s310 + $0x10] sm:$0xff]
        %v330 = vld [vmem:[%s255] sm:$0xf]
        %v331 = vld [vmem:[%s255 + $0x14] sm:$0xf]
        %v332 = vld [vmem:[%s255 + $0x28] sm:$0xf]
        %v333 = vld [vmem:[%s255 + $0x3c] sm:$0xf]
        %v334 = vld [vmem:[%s255 + $0x50] sm:$0xf]
        %v335 = vld [vmem:[%s255 + $0x64] sm:$0xf]
        %v336 = vld [vmem:[%s255 + $0x78] sm:$0xf]
        %v337 = vld [vmem:[%s255 + $0x8c] sm:$0xf]
        %v338 = vld [vmem:[%s255 + $0xa0] sm:$0xf]
        %v339 = vld [vmem:[%s255 + $0xb4] sm:$0xf]
        %v340 = vld [vmem:[%s255 + $0xc8] sm:$0xf]
        %v341 = vld [vmem:[%s255 + $0xdc] sm:$0xf]
        %v342 = vld [vmem:[%s255 + $0xf0] sm:$0xf]
        %v343 = vld [vmem:[%s255 + $0x104] sm:$0xf]
        %v344 = vld [vmem:[%s255 + $0x118] sm:$0xf]
        %v345 = vld [vmem:[%s255 + $0x12c] sm:$0xf]
        %v349 = vunpack.c.l.b16 %v324
        %v350 = vunpack.c.l.b16 %v325
        %v351 = vunpack.c.l.b16 %v326
        %v352 = vpack.c.b16 %v350, %v349
        %v353 = vpack.c.b16 %v351, %v351
        %v372 = vunpack.c.l.b16 %v330
        %v373 = vunpack.c.l.b16 %v331
        %v374 = vunpack.c.l.b16 %v332
        %v375 = vunpack.c.l.b16 %v333
        %v376 = vunpack.c.l.b16 %v334
        %v377 = vunpack.c.l.b16 %v335
        %v378 = vunpack.c.l.b16 %v336
        %v379 = vunpack.c.l.b16 %v337
        %v380 = vunpack.c.l.b16 %v338
        %v381 = vunpack.c.l.b16 %v339
        %v382 = vunpack.c.l.b16 %v340
        %v383 = vunpack.c.l.b16 %v341
        %v384 = vunpack.c.l.b16 %v342
        %v385 = vunpack.c.l.b16 %v343
        %v386 = vunpack.c.l.b16 %v344
        %v387 = vunpack.c.l.b16 %v345
        %v388 = vpack.c.b16 %v373, %v372
        %v389 = vpack.c.b16 %v375, %v374
        %v390 = vpack.c.b16 %v377, %v376
        %v391 = vpack.c.b16 %v379, %v378
        %v392 = vpack.c.b16 %v381, %v380
        %v393 = vpack.c.b16 %v383, %v382
        %v394 = vpack.c.b16 %v385, %v384
        %v395 = vpack.c.b16 %v387, %v386
        %404 = vmatprep.subr.bf16.mxu0 0
        %405 = vmatpush1.bf16.msra.mxu0 %v395
        %406 = vmatprep.subr.bf16.mxu0 0
        %407 = vmatpush1.bf16.msra.mxu0 %v394
        %408 = vmatprep.subr.bf16.mxu0 0
        %409 = vmatpush1.bf16.msra.mxu0 %v393
        %410 = vmatprep.subr.bf16.mxu0 0
        %411 = vmatpush1.bf16.msra.mxu0 %v392
        %412 = vmatprep.subr.bf16.mxu0 0
        %413 = vmatpush1.bf16.msra.mxu0 %v391
        %414 = vmatprep.subr.bf16.mxu0 0
        %415 = vmatpush1.bf16.msra.mxu0 %v390
        %416 = vmatprep.subr.bf16.mxu0 0
        %417 = vmatpush1.bf16.msra.mxu0 %v389
        %418 = vmatprep.subr.bf16.mxu0 0
        %419 = vmatpush1.bf16.msra.mxu0 %v388
        %420 = vmatprep.subr.bf16.mxu0 0
        %421 = vmatpush2.bf16.msra.mxu0 0
        %422 = vmatprep.subr.bf16.mxu0 0
        %423 = vmatpush2.bf16.msra.mxu0 0
        %424 = vmatprep.subr.bf16.mxu0 0
        %425 = vmatpush2.bf16.msra.mxu0 0
        %426 = vmatprep.subr.bf16.mxu0 0
        %427 = vmatpush2.bf16.msra.mxu0 0
        %428 = vmatprep.subr.bf16.mxu0 0
        %429 = vmatpush2.bf16.msra.mxu0 0
        %430 = vmatprep.subr.bf16.mxu0 0
        %431 = vmatpush2.bf16.msra.mxu0 0
        %432 = vmatprep.subr.bf16.mxu0 0
        %433 = vmatpush2.bf16.msra.mxu0 0
        %434 = vmatprep.subr.bf16.mxu0 0
        %435 = vmatpush2.bf16.msra.mxu0 0
        %436 = vmatprep.mubr.bf16.mxu0 0
        %437 = vmatmul.mubr.bf16.gmra.mxu0 %v352
        %v438 = vpop.f32.mrf.mxu0
        %v439 = vadd.f32 0.0, %v438
        %v440 = vpop.f32.mrf.mxu0
        %v441 = vpop.f32.mrf.mxu0
        %v442 = vadd.f32 0.0, %v441
        %v443 = vpop.f32.mrf.mxu0
        %444 = vmatprep.mubr.bf16.mxu0 0
        %445 = vmatmul.mubr.bf16.gmra.mxu0 %v353
        %v446 = vpop.f32.mrf.mxu0
        %v447 = vadd.f32 0.0, %v446
        %v448 = vpop.f32.mrf.mxu0
        %v449 = vpop.f32.mrf.mxu0
        %v450 = vpop.f32.mrf.mxu0
        %451 = vdwg.mxu0
        %453 = vset.pattern.permute.xlu0 0
        %454 = vperm.xlu0 %453, %v327
        %v455 = vpop.permute.xlu0 %454
        %458 = vset.pattern.permute.xlu0 0
        %459 = vperm.xlu0 %458, %v328
        %v460 = vpop.permute.xlu0 %459
        %463 = vset.pattern.permute.xlu0 0
        %464 = vperm.xlu0 %463, %v329
        %v465 = vpop.permute.xlu0 %464
        %v467 = vmul.f32 %v455, %v439
        %v468 = vmul.f32 %v460, %v442
        %v469 = vmul.f32 %v465, %v447
        %v470 = vld [vmem:[%s255 + $0x4] sm:$0xf]
        %v471 = vld [vmem:[%s255 + $0x18] sm:$0xf]
        %v472 = vld [vmem:[%s255 + $0x2c] sm:$0xf]
        %v473 = vld [vmem:[%s255 + $0x40] sm:$0xf]
        %v474 = vld [vmem:[%s255 + $0x54] sm:$0xf]
        %v475 = vld [vmem:[%s255 + $0x68] sm:$0xf]
        %v476 = vld [vmem:[%s255 + $0x7c] sm:$0xf]
        %v477 = vld [vmem:[%s255 + $0x90] sm:$0xf]
        %v478 = vld [vmem:[%s255 + $0xa4] sm:$0xf]
        %v479 = vld [vmem:[%s255 + $0xb8] sm:$0xf]
        %v480 = vld [vmem:[%s255 + $0xcc] sm:$0xf]
        %v481 = vld [vmem:[%s255 + $0xe0] sm:$0xf]
        %v482 = vld [vmem:[%s255 + $0xf4] sm:$0xf]
        %v483 = vld [vmem:[%s255 + $0x108] sm:$0xf]
        %v484 = vld [vmem:[%s255 + $0x11c] sm:$0xf]
        %v485 = vld [vmem:[%s255 + $0x130] sm:$0xf]
        %v502 = vunpack.c.l.b16 %v470
        %v503 = vunpack.c.l.b16 %v471
        %v504 = vunpack.c.l.b16 %v472
        %v505 = vunpack.c.l.b16 %v473
        %v506 = vunpack.c.l.b16 %v474
        %v507 = vunpack.c.l.b16 %v475
        %v508 = vunpack.c.l.b16 %v476
        %v509 = vunpack.c.l.b16 %v477
        %v510 = vunpack.c.l.b16 %v478
        %v511 = vunpack.c.l.b16 %v479
        %v512 = vunpack.c.l.b16 %v480
        %v513 = vunpack.c.l.b16 %v481
        %v514 = vunpack.c.l.b16 %v482
        %v515 = vunpack.c.l.b16 %v483
        %v516 = vunpack.c.l.b16 %v484
        %v517 = vunpack.c.l.b16 %v485
        %v518 = vpack.c.b16 %v503, %v502
        %v519 = vpack.c.b16 %v505, %v504
        %v520 = vpack.c.b16 %v507, %v506
        %v521 = vpack.c.b16 %v509, %v508
        %v522 = vpack.c.b16 %v511, %v510
        %v523 = vpack.c.b16 %v513, %v512
        %v524 = vpack.c.b16 %v515, %v514
        %v525 = vpack.c.b16 %v517, %v516
        %534 = vmatprep.subr.bf16.mxu0 0
        %535 = vmatpush1.bf16.msra.mxu0 %v525
        %536 = vmatprep.subr.bf16.mxu0 0
        %537 = vmatpush1.bf16.msra.mxu0 %v524
        %538 = vmatprep.subr.bf16.mxu0 0
        %539 = vmatpush1.bf16.msra.mxu0 %v523
        %540 = vmatprep.subr.bf16.mxu0 0
        %541 = vmatpush1.bf16.msra.mxu0 %v522
        %542 = vmatprep.subr.bf16.mxu0 0
        %543 = vmatpush1.bf16.msra.mxu0 %v521
        %544 = vmatprep.subr.bf16.mxu0 0
        %545 = vmatpush1.bf16.msra.mxu0 %v520
        %546 = vmatprep.subr.bf16.mxu0 0
        %547 = vmatpush1.bf16.msra.mxu0 %v519
        %548 = vmatprep.subr.bf16.mxu0 0
        %549 = vmatpush1.bf16.msra.mxu0 %v518
        %550 = vmatprep.subr.bf16.mxu0 0
        %551 = vmatpush2.bf16.msra.mxu0 0
        %552 = vmatprep.subr.bf16.mxu0 0
        %553 = vmatpush2.bf16.msra.mxu0 0
        %554 = vmatprep.subr.bf16.mxu0 0
        %555 = vmatpush2.bf16.msra.mxu0 0
        %556 = vmatprep.subr.bf16.mxu0 0
        %557 = vmatpush2.bf16.msra.mxu0 0
        %558 = vmatprep.subr.bf16.mxu0 0
        %559 = vmatpush2.bf16.msra.mxu0 0
        %560 = vmatprep.subr.bf16.mxu0 0
        %561 = vmatpush2.bf16.msra.mxu0 0
        %562 = vmatprep.subr.bf16.mxu0 0
        %563 = vmatpush2.bf16.msra.mxu0 0
        %564 = vmatprep.subr.bf16.mxu0 0
        %565 = vmatpush2.bf16.msra.mxu0 0
        %566 = vmatprep.mubr.bf16.mxu0 0
        %567 = vmatmul.mubr.bf16.gmra.mxu0 %v352
        %v568 = vpop.f32.mrf.mxu0
        %v569 = vadd.f32 0.0, %v568
        %v570 = vpop.f32.mrf.mxu0
        %v571 = vpop.f32.mrf.mxu0
        %v572 = vadd.f32 0.0, %v571
        %v573 = vpop.f32.mrf.mxu0
        %574 = vmatprep.mubr.bf16.mxu0 0
        %575 = vmatmul.mubr.bf16.gmra.mxu0 %v353
        %v576 = vpop.f32.mrf.mxu0
        %v577 = vadd.f32 0.0, %v576
        %v578 = vpop.f32.mrf.mxu0
        %v579 = vpop.f32.mrf.mxu0
        %v580 = vpop.f32.mrf.mxu0
        %581 = vdwg.mxu0
        %582 = vset.pattern.permute.xlu0 1
        %583 = vperm.xlu0 %582, %v327
        %v584 = vpop.permute.xlu0 %583
        %586 = vset.pattern.permute.xlu0 1
        %587 = vperm.xlu0 %586, %v328
        %v588 = vpop.permute.xlu0 %587
        %590 = vset.pattern.permute.xlu0 1
        %591 = vperm.xlu0 %590, %v329
        %v592 = vpop.permute.xlu0 %591
        %v594 = vmul.f32 %v584, %v569
        %v595 = vmul.f32 %v588, %v572
        %v596 = vmul.f32 %v592, %v577
        %v597 = vadd.f32 %v467, %v594
        %v598 = vadd.f32 %v468, %v595
        %v599 = vadd.f32 %v469, %v596
        %v600 = vld [vmem:[%s255 + $0x8] sm:$0xf]
        %v601 = vld [vmem:[%s255 + $0x1c] sm:$0xf]
        %v602 = vld [vmem:[%s255 + $0x30] sm:$0xf]
        %v603 = vld [vmem:[%s255 + $0x44] sm:$0xf]
        %v604 = vld [vmem:[%s255 + $0x58] sm:$0xf]
        %v605 = vld [vmem:[%s255 + $0x6c] sm:$0xf]
        %v606 = vld [vmem:[%s255 + $0x80] sm:$0xf]
        %v607 = vld [vmem:[%s255 + $0x94] sm:$0xf]
        %v608 = vld [vmem:[%s255 + $0xa8] sm:$0xf]
        %v609 = vld [vmem:[%s255 + $0xbc] sm:$0xf]
        %v610 = vld [vmem:[%s255 + $0xd0] sm:$0xf]
        %v611 = vld [vmem:[%s255 + $0xe4] sm:$0xf]
        %v612 = vld [vmem:[%s255 + $0xf8] sm:$0xf]
        %v613 = vld [vmem:[%s255 + $0x10c] sm:$0xf]
        %v614 = vld [vmem:[%s255 + $0x120] sm:$0xf]
        %v615 = vld [vmem:[%s255 + $0x134] sm:$0xf]
        %v632 = vunpack.c.l.b16 %v600
        %v633 = vunpack.c.l.b16 %v601
        %v634 = vunpack.c.l.b16 %v602
        %v635 = vunpack.c.l.b16 %v603
        %v636 = vunpack.c.l.b16 %v604
        %v637 = vunpack.c.l.b16 %v605
        %v638 = vunpack.c.l.b16 %v606
        %v639 = vunpack.c.l.b16 %v607
        %v640 = vunpack.c.l.b16 %v608
        %v641 = vunpack.c.l.b16 %v609
        %v642 = vunpack.c.l.b16 %v610
        %v643 = vunpack.c.l.b16 %v611
        %v644 = vunpack.c.l.b16 %v612
        %v645 = vunpack.c.l.b16 %v613
        %v646 = vunpack.c.l.b16 %v614
        %v647 = vunpack.c.l.b16 %v615
        %v648 = vpack.c.b16 %v633, %v632
        %v649 = vpack.c.b16 %v635, %v634
        %v650 = vpack.c.b16 %v637, %v636
        %v651 = vpack.c.b16 %v639, %v638
        %v652 = vpack.c.b16 %v641, %v640
        %v653 = vpack.c.b16 %v643, %v642
        %v654 = vpack.c.b16 %v645, %v644
        %v655 = vpack.c.b16 %v647, %v646
        %664 = vmatprep.subr.bf16.mxu0 0
        %665 = vmatpush1.bf16.msra.mxu0 %v655
        %666 = vmatprep.subr.bf16.mxu0 0
        %667 = vmatpush1.bf16.msra.mxu0 %v654
        %668 = vmatprep.subr.bf16.mxu0 0
        %669 = vmatpush1.bf16.msra.mxu0 %v653
        %670 = vmatprep.subr.bf16.mxu0 0
        %671 = vmatpush1.bf16.msra.mxu0 %v652
        %672 = vmatprep.subr.bf16.mxu0 0
        %673 = vmatpush1.bf16.msra.mxu0 %v651
        %674 = vmatprep.subr.bf16.mxu0 0
        %675 = vmatpush1.bf16.msra.mxu0 %v650
        %676 = vmatprep.subr.bf16.mxu0 0
        %677 = vmatpush1.bf16.msra.mxu0 %v649
        %678 = vmatprep.subr.bf16.mxu0 0
        %679 = vmatpush1.bf16.msra.mxu0 %v648
        %680 = vmatprep.subr.bf16.mxu0 0
        %681 = vmatpush2.bf16.msra.mxu0 0
        %682 = vmatprep.subr.bf16.mxu0 0
        %683 = vmatpush2.bf16.msra.mxu0 0
        %684 = vmatprep.subr.bf16.mxu0 0
        %685 = vmatpush2.bf16.msra.mxu0 0
        %686 = vmatprep.subr.bf16.mxu0 0
        %687 = vmatpush2.bf16.msra.mxu0 0
        %688 = vmatprep.subr.bf16.mxu0 0
        %689 = vmatpush2.bf16.msra.mxu0 0
        %690 = vmatprep.subr.bf16.mxu0 0
        %691 = vmatpush2.bf16.msra.mxu0 0
        %692 = vmatprep.subr.bf16.mxu0 0
        %693 = vmatpush2.bf16.msra.mxu0 0
        %694 = vmatprep.subr.bf16.mxu0 0
        %695 = vmatpush2.bf16.msra.mxu0 0
        %696 = vmatprep.mubr.bf16.mxu0 0
        %697 = vmatmul.mubr.bf16.gmra.mxu0 %v352
        %v698 = vpop.f32.mrf.mxu0
        %v699 = vadd.f32 0.0, %v698
        %v700 = vpop.f32.mrf.mxu0
        %v701 = vpop.f32.mrf.mxu0
        %v702 = vadd.f32 0.0, %v701
        %v703 = vpop.f32.mrf.mxu0
        %704 = vmatprep.mubr.bf16.mxu0 0
        %705 = vmatmul.mubr.bf16.gmra.mxu0 %v353
        %v706 = vpop.f32.mrf.mxu0
        %v707 = vadd.f32 0.0, %v706
        %v708 = vpop.f32.mrf.mxu0
        %v709 = vpop.f32.mrf.mxu0
        %v710 = vpop.f32.mrf.mxu0
        %711 = vdwg.mxu0
        %712 = vset.pattern.permute.xlu0 2
        %713 = vperm.xlu0 %712, %v327
        %v714 = vpop.permute.xlu0 %713
        %716 = vset.pattern.permute.xlu0 2
        %717 = vperm.xlu0 %716, %v328
        %v718 = vpop.permute.xlu0 %717
        %720 = vset.pattern.permute.xlu0 2
        %721 = vperm.xlu0 %720, %v329
        %v722 = vpop.permute.xlu0 %721
        %v724 = vmul.f32 %v714, %v699
        %v725 = vmul.f32 %v718, %v702
        %v726 = vmul.f32 %v722, %v707
        %v727 = vadd.f32 %v597, %v724
        %v728 = vadd.f32 %v598, %v725
        %v729 = vadd.f32 %v599, %v726
        %v730 = vld [vmem:[%s255 + $0xc] sm:$0xf]
        %v731 = vld [vmem:[%s255 + $0x20] sm:$0xf]
        %v732 = vld [vmem:[%s255 + $0x34] sm:$0xf]
        %v733 = vld [vmem:[%s255 + $0x48] sm:$0xf]
        %v734 = vld [vmem:[%s255 + $0x5c] sm:$0xf]
        %v735 = vld [vmem:[%s255 + $0x70] sm:$0xf]
        %v736 = vld [vmem:[%s255 + $0x84] sm:$0xf]
        %v737 = vld [vmem:[%s255 + $0x98] sm:$0xf]
        %v738 = vld [vmem:[%s255 + $0xac] sm:$0xf]
        %v739 = vld [vmem:[%s255 + $0xc0] sm:$0xf]
        %v740 = vld [vmem:[%s255 + $0xd4] sm:$0xf]
        %v741 = vld [vmem:[%s255 + $0xe8] sm:$0xf]
        %v742 = vld [vmem:[%s255 + $0xfc] sm:$0xf]
        %v743 = vld [vmem:[%s255 + $0x110] sm:$0xf]
        %v744 = vld [vmem:[%s255 + $0x124] sm:$0xf]
        %v745 = vld [vmem:[%s255 + $0x138] sm:$0xf]
        %v762 = vunpack.c.l.b16 %v730
        %v763 = vunpack.c.l.b16 %v731
        %v764 = vunpack.c.l.b16 %v732
        %v765 = vunpack.c.l.b16 %v733
        %v766 = vunpack.c.l.b16 %v734
        %v767 = vunpack.c.l.b16 %v735
        %v768 = vunpack.c.l.b16 %v736
        %v769 = vunpack.c.l.b16 %v737
        %v770 = vunpack.c.l.b16 %v738
        %v771 = vunpack.c.l.b16 %v739
        %v772 = vunpack.c.l.b16 %v740
        %v773 = vunpack.c.l.b16 %v741
        %v774 = vunpack.c.l.b16 %v742
        %v775 = vunpack.c.l.b16 %v743
        %v776 = vunpack.c.l.b16 %v744
        %v777 = vunpack.c.l.b16 %v745
        %v778 = vpack.c.b16 %v763, %v762
        %v779 = vpack.c.b16 %v765, %v764
        %v780 = vpack.c.b16 %v767, %v766
        %v781 = vpack.c.b16 %v769, %v768
        %v782 = vpack.c.b16 %v771, %v770
        %v783 = vpack.c.b16 %v773, %v772
        %v784 = vpack.c.b16 %v775, %v774
        %v785 = vpack.c.b16 %v777, %v776
        %794 = vmatprep.subr.bf16.mxu0 0
        %795 = vmatpush1.bf16.msra.mxu0 %v785
        %796 = vmatprep.subr.bf16.mxu0 0
        %797 = vmatpush1.bf16.msra.mxu0 %v784
        %798 = vmatprep.subr.bf16.mxu0 0
        %799 = vmatpush1.bf16.msra.mxu0 %v783
        %800 = vmatprep.subr.bf16.mxu0 0
        %801 = vmatpush1.bf16.msra.mxu0 %v782
        %802 = vmatprep.subr.bf16.mxu0 0
        %803 = vmatpush1.bf16.msra.mxu0 %v781
        %804 = vmatprep.subr.bf16.mxu0 0
        %805 = vmatpush1.bf16.msra.mxu0 %v780
        %806 = vmatprep.subr.bf16.mxu0 0
        %807 = vmatpush1.bf16.msra.mxu0 %v779
        %808 = vmatprep.subr.bf16.mxu0 0
        %809 = vmatpush1.bf16.msra.mxu0 %v778
        %810 = vmatprep.subr.bf16.mxu0 0
        %811 = vmatpush2.bf16.msra.mxu0 0
        %812 = vmatprep.subr.bf16.mxu0 0
        %813 = vmatpush2.bf16.msra.mxu0 0
        %814 = vmatprep.subr.bf16.mxu0 0
        %815 = vmatpush2.bf16.msra.mxu0 0
        %816 = vmatprep.subr.bf16.mxu0 0
        %817 = vmatpush2.bf16.msra.mxu0 0
        %818 = vmatprep.subr.bf16.mxu0 0
        %819 = vmatpush2.bf16.msra.mxu0 0
        %820 = vmatprep.subr.bf16.mxu0 0
        %821 = vmatpush2.bf16.msra.mxu0 0
        %822 = vmatprep.subr.bf16.mxu0 0
        %823 = vmatpush2.bf16.msra.mxu0 0
        %824 = vmatprep.subr.bf16.mxu0 0
        %825 = vmatpush2.bf16.msra.mxu0 0
        %826 = vmatprep.mubr.bf16.mxu0 0
        %827 = vmatmul.mubr.bf16.gmra.mxu0 %v352
        %v828 = vpop.f32.mrf.mxu0
        %v829 = vadd.f32 0.0, %v828
        %v830 = vpop.f32.mrf.mxu0
        %v831 = vpop.f32.mrf.mxu0
        %v832 = vadd.f32 0.0, %v831
        %v833 = vpop.f32.mrf.mxu0
        %834 = vmatprep.mubr.bf16.mxu0 0
        %835 = vmatmul.mubr.bf16.gmra.mxu0 %v353
        %v836 = vpop.f32.mrf.mxu0
        %v837 = vadd.f32 0.0, %v836
        %v838 = vpop.f32.mrf.mxu0
        %v839 = vpop.f32.mrf.mxu0
        %v840 = vpop.f32.mrf.mxu0
        %841 = vdwg.mxu0
        %842 = vset.pattern.permute.xlu0 3
        %843 = vperm.xlu0 %842, %v327
        %v844 = vpop.permute.xlu0 %843
        %846 = vset.pattern.permute.xlu0 3
        %847 = vperm.xlu0 %846, %v328
        %v848 = vpop.permute.xlu0 %847
        %850 = vset.pattern.permute.xlu0 3
        %851 = vperm.xlu0 %850, %v329
        %v852 = vpop.permute.xlu0 %851
        %v854 = vmul.f32 %v844, %v829
        %v855 = vmul.f32 %v848, %v832
        %v856 = vmul.f32 %v852, %v837
        %v857 = vadd.f32 %v727, %v854
        %v858 = vadd.f32 %v728, %v855
        %v859 = vadd.f32 %v729, %v856
        %v860 = vld [vmem:[%s255 + $0x10] sm:$0xf]
        %v861 = vld [vmem:[%s255 + $0x24] sm:$0xf]
        %v862 = vld [vmem:[%s255 + $0x38] sm:$0xf]
        %v863 = vld [vmem:[%s255 + $0x4c] sm:$0xf]
        %v864 = vld [vmem:[%s255 + $0x60] sm:$0xf]
        %v865 = vld [vmem:[%s255 + $0x74] sm:$0xf]
        %v866 = vld [vmem:[%s255 + $0x88] sm:$0xf]
        %v867 = vld [vmem:[%s255 + $0x9c] sm:$0xf]
        %v868 = vld [vmem:[%s255 + $0xb0] sm:$0xf]
        %v869 = vld [vmem:[%s255 + $0xc4] sm:$0xf]
        %v870 = vld [vmem:[%s255 + $0xd8] sm:$0xf]
        %v871 = vld [vmem:[%s255 + $0xec] sm:$0xf]
        %v872 = vld [vmem:[%s255 + $0x100] sm:$0xf]
        %v873 = vld [vmem:[%s255 + $0x114] sm:$0xf]
        %v874 = vld [vmem:[%s255 + $0x128] sm:$0xf]
        %v875 = vld [vmem:[%s255 + $0x13c] sm:$0xf]
        %v892 = vunpack.c.l.b16 %v860
        %v893 = vunpack.c.l.b16 %v861
        %v894 = vunpack.c.l.b16 %v862
        %v895 = vunpack.c.l.b16 %v863
        %v896 = vunpack.c.l.b16 %v864
        %v897 = vunpack.c.l.b16 %v865
        %v898 = vunpack.c.l.b16 %v866
        %v899 = vunpack.c.l.b16 %v867
        %v900 = vunpack.c.l.b16 %v868
        %v901 = vunpack.c.l.b16 %v869
        %v902 = vunpack.c.l.b16 %v870
        %v903 = vunpack.c.l.b16 %v871
        %v904 = vunpack.c.l.b16 %v872
        %v905 = vunpack.c.l.b16 %v873
        %v906 = vunpack.c.l.b16 %v874
        %v907 = vunpack.c.l.b16 %v875
        %v908 = vpack.c.b16 %v893, %v892
        %v909 = vpack.c.b16 %v895, %v894
        %v910 = vpack.c.b16 %v897, %v896
        %v911 = vpack.c.b16 %v899, %v898
        %v912 = vpack.c.b16 %v901, %v900
        %v913 = vpack.c.b16 %v903, %v902
        %v914 = vpack.c.b16 %v905, %v904
        %v915 = vpack.c.b16 %v907, %v906
        %924 = vmatprep.subr.bf16.mxu0 0
        %925 = vmatpush1.bf16.msra.mxu0 %v915
        %926 = vmatprep.subr.bf16.mxu0 0
        %927 = vmatpush1.bf16.msra.mxu0 %v914
        %928 = vmatprep.subr.bf16.mxu0 0
        %929 = vmatpush1.bf16.msra.mxu0 %v913
        %930 = vmatprep.subr.bf16.mxu0 0
        %931 = vmatpush1.bf16.msra.mxu0 %v912
        %932 = vmatprep.subr.bf16.mxu0 0
        %933 = vmatpush1.bf16.msra.mxu0 %v911
        %934 = vmatprep.subr.bf16.mxu0 0
        %935 = vmatpush1.bf16.msra.mxu0 %v910
        %936 = vmatprep.subr.bf16.mxu0 0
        %937 = vmatpush1.bf16.msra.mxu0 %v909
        %938 = vmatprep.subr.bf16.mxu0 0
        %939 = vmatpush1.bf16.msra.mxu0 %v908
        %940 = vmatprep.subr.bf16.mxu0 0
        %941 = vmatpush2.bf16.msra.mxu0 0
        %942 = vmatprep.subr.bf16.mxu0 0
        %943 = vmatpush2.bf16.msra.mxu0 0
        %944 = vmatprep.subr.bf16.mxu0 0
        %945 = vmatpush2.bf16.msra.mxu0 0
        %946 = vmatprep.subr.bf16.mxu0 0
        %947 = vmatpush2.bf16.msra.mxu0 0
        %948 = vmatprep.subr.bf16.mxu0 0
        %949 = vmatpush2.bf16.msra.mxu0 0
        %950 = vmatprep.subr.bf16.mxu0 0
        %951 = vmatpush2.bf16.msra.mxu0 0
        %952 = vmatprep.subr.bf16.mxu0 0
        %953 = vmatpush2.bf16.msra.mxu0 0
        %954 = vmatprep.subr.bf16.mxu0 0
        %955 = vmatpush2.bf16.msra.mxu0 0
        %956 = vmatprep.mubr.bf16.mxu0 0
        %957 = vmatmul.mubr.bf16.gmra.mxu0 %v352
        %v958 = vpop.f32.mrf.mxu0
        %v959 = vadd.f32 0.0, %v958
        %v960 = vpop.f32.mrf.mxu0
        %v961 = vpop.f32.mrf.mxu0
        %v962 = vadd.f32 0.0, %v961
        %v963 = vpop.f32.mrf.mxu0
        %964 = vmatprep.mubr.bf16.mxu0 0
        %965 = vmatmul.mubr.bf16.gmra.mxu0 %v353
        %v966 = vpop.f32.mrf.mxu0
        %v967 = vadd.f32 0.0, %v966
        %v968 = vpop.f32.mrf.mxu0
        %v969 = vpop.f32.mrf.mxu0
        %v970 = vpop.f32.mrf.mxu0
        %971 = vdwg.mxu0
        %972 = vset.pattern.permute.xlu0 4
        %973 = vperm.xlu0 %972, %v327
        %v974 = vpop.permute.xlu0 %973
        %976 = vset.pattern.permute.xlu0 4
        %977 = vperm.xlu0 %976, %v328
        %v978 = vpop.permute.xlu0 %977
        %980 = vset.pattern.permute.xlu0 4
        %981 = vperm.xlu0 %980, %v329
        %v982 = vpop.permute.xlu0 %981
        %v984 = vmul.f32 %v974, %v959
        %v985 = vmul.f32 %v978, %v962
        %v986 = vmul.f32 %v982, %v967
        %v987 = vadd.f32 %v857, %v984
        %v988 = vadd.f32 %v858, %v985
        %v989 = vadd.f32 %v859, %v986
        %v990 = vld [vmem:[%s263] sm:$0x1]
        %v992 = vlaneseq
        %v993 = vshrl.u32 %v992, 7
        %v994 = vsub.s32 0, %v993
        %v995 = vrot.slane %v990, %v994
        %v997 = vadd.f32 %v987, %v995
        %v998 = vadd.f32 %v988, %v995
        %v999 = vadd.f32 %v989, %v995
        %v1000 = vpack.c.bf16 %v998, %v997
        %v1001 = vpack.c.bf16 %v999, %v999
        %v1004 = vunpack.c.l.b16 %v1000
        %v1005 = vunpack.c.h.b16 %v1000
        %v1006 = vunpack.c.l.b16 %v1001
        %v1007 = vpack.c.b16 %v1004, %v1004
        %v1008 = vpack.c.b16 %v1005, %v1005
        %v1009 = vpack.c.b16 %v1006, %v1006
        %1013 = vst [vmem:[%s305] sm:$0xf] %v1007
        %1014 = vst [vmem:[%s305 + $0x4] sm:$0xf] %v1008
        %1015 = vst [vmem:[%s305 + $0x8] sm:$0xf] %v1009
        %s1016 = sand.u32 %s152, 1
        %s1017 = scalar_lea.sflag [#allocation4], %s1016
        %s1018 = sand.u32 %s152, 1
        %s1019 = smul.addr %s1018, 12
        %s1020 = scalar_lea.vmem [#allocation7], %s1019
        // Predicated region
        $region45: #{tpu_custom_call.1} parent=35 // pred_check
          %p1021 = pneg %p162
        $region46: #{tpu_custom_call.1} parent=35 // pred_check_branch
          %1023 = sbr.rel (%p1021) target = $region48
        $region47: #{tpu_custom_call.1} parent=35 // pred_region
          %s1024 = smul.u32 3, %s29
          %s1026 = ssub.s32 192, 192
          %1027 = vsyncadd %s1017, %s1026
          %s1028 = smul.addr %s28, 3
          %s1029 = sadd.s32 %s1024, %s1028
          %s1030 = smul.addr %s1029, 64
          %s1031 = scalar_lea.hbm %s4, %s1030
          %s1032 = sshll.u32 %s1020, 4
          %s1033 = int_to_ptr.vmem [resolvable:$true] %s1032
          %1038 = dma.vmem_to_hbm [thread:$0]  %s1033, 192, %s1031, %s1017, 64, 64, 4
        $region48: #{tpu_custom_call.1} parent=35 // pred_fallthru
          _
      $region36: #{tpu_custom_call.1} parent=5 // pred_fallthru
        _
      %p1039 = scmp.le.s32.totalorder 2, %s19
      // Predicated region
      $region49: #{tpu_custom_call.1} parent=5 // pred_check
        %p1040 = pneg %p1039
      $region50: #{tpu_custom_call.1} parent=5 // pred_check_branch
        %1042 = sbr.rel (%p1040) target = $region52
      $region51: #{tpu_custom_call.1} parent=5 // pred_region
        %s1043 = ssub.s32 %s19, 2
        // Predicated region
        $region53: #{tpu_custom_call.1} parent=51 // pred_check
          %p1044 = pneg %p168
        $region54: #{tpu_custom_call.1} parent=51 // pred_check_branch
          %1046 = sbr.rel (%p1044) target = $region56
        $region55: #{tpu_custom_call.1} parent=51 // pred_region
          %s1047 = sand.u32 %s153, 1
          %s1048 = scalar_lea.sflag [#allocation4], %s1047
          %s1049 = sand.u32 %s153, 1
          %s1050 = smul.addr %s1049, 12
          %s1051 = scalar_lea.vmem [#allocation7], %s1050
          %1052 = dma.done %s1048, 192
        $region56: #{tpu_custom_call.1} parent=51 // pred_fallthru
          _
      $region52: #{tpu_custom_call.1} parent=5 // pred_fallthru
        _
    $region6: #{tpu_custom_call.1} parent=1 // loop_footer
      %s23 = sadd.s32 1, %s19
    $region7: #{tpu_custom_call.1} parent=1 // loop_footer_branch
      %18 = sbr.rel target = $region3
    $region8: #{tpu_custom_call.1} parent=1 // loop_exit
      _
    %1053 = vsyncpa [#allocation3], 1
    %s1054 = scalar_lea.sflag [#allocation3], 1
    %1055 = vsyncpa %s1054, 1
    %1056 = vsyncpa [#allocation6], 1
    %s1057 = scalar_lea.sflag [#allocation6], 1
    %1058 = vsyncpa %s1057, 1
    %1059 = vsyncpa [#allocation4], 1
    %s1060 = scalar_lea.sflag [#allocation4], 1
    %1061 = vsyncpa %s1060, 1

</llo_original>
